<compile_context>
chip_gen: v7x
topology: tpu7x:2x2x1
jax: 0.10.0
libtpu: 0.0.40
codegen_flags: <defaults>
</compile_context>

<pallas_src>
import jax
import jax.numpy as jnp
from jax import lax
from jax.experimental import pallas as pl
from jax.experimental.pallas import tpu as pltpu

_LANE = 128
_SUBLANE = 8
_TB = 128  # batch rows gathered per grid step (when the batch allows)


def _round_up(x, m):
    return (x + m - 1) // m * m


def glove_gather_kernel(i_ids_ref, j_ids_ref, wi_hbm, wj_hbm, out_ref,
                        wi_buf, wj_buf, sem):
    """One grid step: gather TB rows of each table, fused dot per row."""
    tb = out_ref.shape[0]                     # rows handled by this tile
    base = pl.program_id(0) * tb              # first batch row of this tile

    # Issue all 2*TB row copies (HBM -> VMEM); they proceed concurrently.
    def issue(t, carry):
        i_row = i_ids_ref[base + t]
        j_row = j_ids_ref[base + t]
        pltpu.make_async_copy(wi_hbm.at[i_row], wi_buf.at[t], sem.at[0]).start()
        pltpu.make_async_copy(wj_hbm.at[j_row], wj_buf.at[t], sem.at[1]).start()
        return carry

    lax.fori_loop(0, tb, issue, 0, unroll=8)

    # Drain: one wait per issued copy (all copies are the same size, so the
    # shared per-table semaphore accounting is exact; after the loop every
    # row is guaranteed resident).
    def drain(t, carry):
        pltpu.make_async_copy(wi_hbm.at[0], wi_buf.at[0], sem.at[0]).wait()
        pltpu.make_async_copy(wj_hbm.at[0], wj_buf.at[0], sem.at[1]).wait()
        return carry

    lax.fori_loop(0, tb, drain, 0)

    # Augmented-row dot product == sum(w_i * w_j) + b_i + b_j (see wrapper).
    prod = wi_buf[...] * wj_buf[...]                       # (TB, Dp), VPU
    out_ref[...] = jnp.sum(prod, axis=1, keepdims=True)    # (TB, 1), XLU reduce


def prepare_glove_tables(wi, wj, bi, bj):
    """One-time parameter preprocessing: fold biases and pad to lane width.

    wi_aug = [wi | bi | 1], wj_aug = [wj | 1 | bj]  (then zero-pad to 128k),
    so that dot(wi_aug[i], wj_aug[j]) == sum(wi[i]*wj[j]) + bi[i] + bj[j].
    """
    V, D = wi.shape
    ones = jnp.ones((V, 1), dtype=wi.dtype)
    wi_aug = jnp.concatenate([wi, bi, ones], axis=1)
    wj_aug = jnp.concatenate([wj, ones, bj], axis=1)
    Dp = _round_up(D + 2, _LANE)
    pad = Dp - (D + 2)
    if pad:
        wi_aug = jnp.pad(wi_aug, ((0, 0), (0, pad)))
        wj_aug = jnp.pad(wj_aug, ((0, 0), (0, pad)))
    return wi_aug.astype(jnp.float32), wj_aug.astype(jnp.float32)


def glove_forward(i_indices, j_indices, wi_aug, wj_aug):
    """Pallas-backed GloveModel.forward on prepared tables. Returns (B,) f32."""
    B = i_indices.shape[0]
    Dp = wi_aug.shape[1]

    TB = _TB if B >= _TB else _round_up(B, _SUBLANE)
    B_pad = _round_up(B, TB)
    n_tiles = B_pad // TB

    # Pad indices with 0 (a valid row); padded rows are sliced off below.
    i_pad = jnp.zeros((B_pad,), jnp.int32).at[:B].set(i_indices.astype(jnp.int32))
    j_pad = jnp.zeros((B_pad,), jnp.int32).at[:B].set(j_indices.astype(jnp.int32))

    out = pl.pallas_call(
        glove_gather_kernel,
        out_shape=jax.ShapeDtypeStruct((B_pad, 1), jnp.float32),
        grid_spec=pltpu.PrefetchScalarGridSpec(
            num_scalar_prefetch=2,
            grid=(n_tiles,),
            in_specs=[
                pl.BlockSpec(memory_space=pl.ANY),   # wi_aug stays in HBM
                pl.BlockSpec(memory_space=pl.ANY),   # wj_aug stays in HBM
            ],
            out_specs=pl.BlockSpec((TB, 1), lambda tile, i_ids, j_ids: (tile, 0)),
            scratch_shapes=[
                pltpu.VMEM((TB, Dp), jnp.float32),   # gathered wi rows
                pltpu.VMEM((TB, Dp), jnp.float32),   # gathered wj rows
                pltpu.SemaphoreType.DMA((2,)),       # one DMA sem per table
            ],
        ),
        compiler_params=pltpu.CompilerParams(
            dimension_semantics=("parallel",),
        ),
    )(i_pad, j_pad, wi_aug, wj_aug)
    return out[:B, 0]


def glove_forward_from_params(i_indices, j_indices, wi, wj, bi, bj):
    """Convenience wrapper matching the torch module signature."""
    wi_aug, wj_aug = prepare_glove_tables(wi, wj, bi, bj)
    return glove_forward(i_indices, j_indices, wi_aug, wj_aug)


def init_glove_params(key, vocab_size, embedding_dim):
    """Deterministic parameter init mirroring GloveModel.__init__."""
    k_wi, k_wj = jax.random.split(key)
    wi = jax.random.uniform(k_wi, (vocab_size, embedding_dim),
                            dtype=jnp.float32, minval=-1.0, maxval=1.0)
    wj = jax.random.uniform(k_wj, (vocab_size, embedding_dim),
                            dtype=jnp.float32, minval=-1.0, maxval=1.0)
    bi = jnp.zeros((vocab_size, 1), dtype=jnp.float32)
    bj = jnp.zeros((vocab_size, 1), dtype=jnp.float32)
    return wi, wj, bi, bj


def glove_forward_ref(i_indices, j_indices, wi, wj, bi, bj):
    """Pure-JAX reference for correctness checking."""
    w_i = wi[i_indices]
    w_j = wj[j_indices]
    b_i = bi[i_indices][:, 0]
    b_j = bj[j_indices][:, 0]
    return jnp.sum(w_i * w_j, axis=1) + b_i + b_j


if __name__ == "__main__":
    key = jax.random.PRNGKey(0)
    k_params, k_i, k_j, k_bi, k_bj, k_params2, k_i2, k_j2 = jax.random.split(key, 8)

    # --- Case 1: module-faithful (zero biases, as in GloveModel.__init__) ---
    vocab_size, embedding_dim, batch = 64, 32, 8
    wi, wj, bi, bj = init_glove_params(k_params, vocab_size, embedding_dim)
    i_idx = jax.random.randint(k_i, (batch,), 0, vocab_size, dtype=jnp.int32)
    j_idx = jax.random.randint(k_j, (batch,), 0, vocab_size, dtype=jnp.int32)

    out = glove_forward_from_params(i_idx, j_idx, wi, wj, bi, bj)
    out = jax.block_until_ready(out)
    ref = glove_forward_ref(i_idx, j_idx, wi, wj, bi, bj)
    assert out.shape == (batch,), out.shape
    assert jnp.allclose(out, ref, atol=1e-5, rtol=1e-5), (out, ref)

    # --- Case 2: non-zero biases (exercise the bias-folding path) ---
    bi_r = jax.random.uniform(k_bi, (vocab_size, 1), dtype=jnp.float32,
                              minval=-1.0, maxval=1.0)
    bj_r = jax.random.uniform(k_bj, (vocab_size, 1), dtype=jnp.float32,
                              minval=-1.0, maxval=1.0)
    out2 = glove_forward_from_params(i_idx, j_idx, wi, wj, bi_r, bj_r)
    out2 = jax.block_until_ready(out2)
    ref2 = glove_forward_ref(i_idx, j_idx, wi, wj, bi_r, bj_r)
    assert jnp.allclose(out2, ref2, atol=1e-5, rtol=1e-5), (out2, ref2)

    # --- Case 3: multi-tile batch with padding (batch not a multiple of 128) ---
    vocab2, dim2, batch2 = 256, 32, 160
    wi2, wj2, _, _ = init_glove_params(k_params2, vocab2, dim2)
    bi2 = jax.random.uniform(k_bi, (vocab2, 1), dtype=jnp.float32, minval=-1.0, maxval=1.0)
    bj2 = jax.random.uniform(k_bj, (vocab2, 1), dtype=jnp.float32, minval=-1.0, maxval=1.0)
    i2 = jax.random.randint(k_i2, (batch2,), 0, vocab2, dtype=jnp.int32)
    j2 = jax.random.randint(k_j2, (batch2,), 0, vocab2, dtype=jnp.int32)
    out3 = glove_forward_from_params(i2, j2, wi2, wj2, bi2, bj2)
    out3 = jax.block_until_ready(out3)
    ref3 = glove_forward_ref(i2, j2, wi2, wj2, bi2, bj2)
    assert out3.shape == (batch2,), out3.shape
    assert jnp.allclose(out3, ref3, atol=1e-5, rtol=1e-5), (out3, ref3)

    print("KERNEL_OK")
</pallas_src>

<mosaic_0001>
module attributes {stable_mosaic.version = 11 : i64} {
  func.func @glove_gather_kernel(%arg0: i32, %arg1: memref<8xi32, #tpu.memory_space<smem>>, %arg2: memref<8xi32, #tpu.memory_space<smem>>, %arg3: memref<64x128xf32, #tpu.memory_space<any>>, %arg4: memref<64x128xf32, #tpu.memory_space<any>>, %arg5: memref<8x1xf32, #tpu.memory_space<vmem>>, %arg6: memref<8x128xf32, #tpu.memory_space<vmem>>, %arg7: memref<8x128xf32, #tpu.memory_space<vmem>>, %arg8: memref<2x!tpu.dma_semaphore, #tpu.memory_space<semaphore_mem>>) attributes {dimension_semantics = [#tpu.dimension_semantics<parallel>], iteration_bounds = array<i64: 1>, scalar_prefetch = 2 : i64, scratch_operands = 3 : i64, tpu.core_type = #tpu.core_type<tc>, window_params = [{}, {}, {transform_indices = @transform_2, window_bounds = array<i64: 8, 1>}]} {
    %c8_i32 = arith.constant 8 : i32
    %0 = arith.muli %arg0, %c8_i32 : i32
    %c0_i32 = arith.constant 0 : i32
    %1 = arith.addi %0, %c0_i32 : i32
    %2 = arith.index_cast %1 : i32 to index
    %3 = memref.load %arg1[%2] : memref<8xi32, #tpu.memory_space<smem>>
    %4 = arith.addi %0, %c0_i32 : i32
    %5 = arith.index_cast %4 : i32 to index
    %6 = memref.load %arg2[%5] : memref<8xi32, #tpu.memory_space<smem>>
    %c0_i32_0 = arith.constant 0 : i32
    %c0_i32_1 = arith.constant 0 : i32
    %7 = tpu.memref_slice %arg3[%3, %c0_i32_1] : memref<64x128xf32, #tpu.memory_space<any>> -> memref<1x128xf32, #tpu.memory_space<any>>
    %8 = tpu.memref_squeeze %7 : memref<1x128xf32, #tpu.memory_space<any>> -> memref<128xf32, #tpu.memory_space<any>>
    %c0_i32_2 = arith.constant 0 : i32
    %9 = tpu.memref_slice %arg6[%c0_i32, %c0_i32_2] : memref<8x128xf32, #tpu.memory_space<vmem>> -> memref<1x128xf32, #tpu.memory_space<vmem>>
    %10 = tpu.memref_squeeze %9 : memref<1x128xf32, #tpu.memory_space<vmem>> -> memref<128xf32, #tpu.memory_space<vmem>>
    %11 = tpu.memref_slice %arg8[%c0_i32_0] : memref<2x!tpu.dma_semaphore, #tpu.memory_space<semaphore_mem>> -> memref<1x!tpu.dma_semaphore, #tpu.memory_space<semaphore_mem>>
    %12 = tpu.memref_squeeze %11 : memref<1x!tpu.dma_semaphore, #tpu.memory_space<semaphore_mem>> -> memref<!tpu.dma_semaphore, #tpu.memory_space<semaphore_mem>>
    tpu.enqueue_dma source(%8 : memref<128xf32, #tpu.memory_space<any>>) target(%10 : memref<128xf32, #tpu.memory_space<vmem>>) target_semaphore(%12 : memref<!tpu.dma_semaphore, #tpu.memory_space<semaphore_mem>>)
    %c1_i32 = arith.constant 1 : i32
    %c0_i32_3 = arith.constant 0 : i32
    %13 = tpu.memref_slice %arg4[%6, %c0_i32_3] : memref<64x128xf32, #tpu.memory_space<any>> -> memref<1x128xf32, #tpu.memory_space<any>>
    %14 = tpu.memref_squeeze %13 : memref<1x128xf32, #tpu.memory_space<any>> -> memref<128xf32, #tpu.memory_space<any>>
    %c0_i32_4 = arith.constant 0 : i32
    %15 = tpu.memref_slice %arg7[%c0_i32, %c0_i32_4] : memref<8x128xf32, #tpu.memory_space<vmem>> -> memref<1x128xf32, #tpu.memory_space<vmem>>
    %16 = tpu.memref_squeeze %15 : memref<1x128xf32, #tpu.memory_space<vmem>> -> memref<128xf32, #tpu.memory_space<vmem>>
    %17 = tpu.memref_slice %arg8[%c1_i32] : memref<2x!tpu.dma_semaphore, #tpu.memory_space<semaphore_mem>> -> memref<1x!tpu.dma_semaphore, #tpu.memory_space<semaphore_mem>>
    %18 = tpu.memref_squeeze %17 : memref<1x!tpu.dma_semaphore, #tpu.memory_space<semaphore_mem>> -> memref<!tpu.dma_semaphore, #tpu.memory_space<semaphore_mem>>
    tpu.enqueue_dma source(%14 : memref<128xf32, #tpu.memory_space<any>>) target(%16 : memref<128xf32, #tpu.memory_space<vmem>>) target_semaphore(%18 : memref<!tpu.dma_semaphore, #tpu.memory_space<semaphore_mem>>)
    %c1_i32_5 = arith.constant 1 : i32
    %19 = arith.addi %0, %c1_i32_5 : i32
    %20 = arith.index_cast %19 : i32 to index
    %21 = memref.load %arg1[%20] : memref<8xi32, #tpu.memory_space<smem>>
    %22 = arith.addi %0, %c1_i32_5 : i32
    %23 = arith.index_cast %22 : i32 to index
    %24 = memref.load %arg2[%23] : memref<8xi32, #tpu.memory_space<smem>>
    %c0_i32_6 = arith.constant 0 : i32
    %c0_i32_7 = arith.constant 0 : i32
    %25 = tpu.memref_slice %arg3[%21, %c0_i32_7] : memref<64x128xf32, #tpu.memory_space<any>> -> memref<1x128xf32, #tpu.memory_space<any>>
    %26 = tpu.memref_squeeze %25 : memref<1x128xf32, #tpu.memory_space<any>> -> memref<128xf32, #tpu.memory_space<any>>
    %c0_i32_8 = arith.constant 0 : i32
    %27 = tpu.memref_slice %arg6[%c1_i32_5, %c0_i32_8] : memref<8x128xf32, #tpu.memory_space<vmem>> -> memref<1x128xf32, #tpu.memory_space<vmem>>
    %28 = tpu.memref_squeeze %27 : memref<1x128xf32, #tpu.memory_space<vmem>> -> memref<128xf32, #tpu.memory_space<vmem>>
    %29 = tpu.memref_slice %arg8[%c0_i32_6] : memref<2x!tpu.dma_semaphore, #tpu.memory_space<semaphore_mem>> -> memref<1x!tpu.dma_semaphore, #tpu.memory_space<semaphore_mem>>
    %30 = tpu.memref_squeeze %29 : memref<1x!tpu.dma_semaphore, #tpu.memory_space<semaphore_mem>> -> memref<!tpu.dma_semaphore, #tpu.memory_space<semaphore_mem>>
    tpu.enqueue_dma source(%26 : memref<128xf32, #tpu.memory_space<any>>) target(%28 : memref<128xf32, #tpu.memory_space<vmem>>) target_semaphore(%30 : memref<!tpu.dma_semaphore, #tpu.memory_space<semaphore_mem>>)
    %c1_i32_9 = arith.constant 1 : i32
    %c0_i32_10 = arith.constant 0 : i32
    %31 = tpu.memref_slice %arg4[%24, %c0_i32_10] : memref<64x128xf32, #tpu.memory_space<any>> -> memref<1x128xf32, #tpu.memory_space<any>>
    %32 = tpu.memref_squeeze %31 : memref<1x128xf32, #tpu.memory_space<any>> -> memref<128xf32, #tpu.memory_space<any>>
    %c0_i32_11 = arith.constant 0 : i32
    %33 = tpu.memref_slice %arg7[%c1_i32_5, %c0_i32_11] : memref<8x128xf32, #tpu.memory_space<vmem>> -> memref<1x128xf32, #tpu.memory_space<vmem>>
    %34 = tpu.memref_squeeze %33 : memref<1x128xf32, #tpu.memory_space<vmem>> -> memref<128xf32, #tpu.memory_space<vmem>>
    %35 = tpu.memref_slice %arg8[%c1_i32_9] : memref<2x!tpu.dma_semaphore, #tpu.memory_space<semaphore_mem>> -> memref<1x!tpu.dma_semaphore, #tpu.memory_space<semaphore_mem>>
    %36 = tpu.memref_squeeze %35 : memref<1x!tpu.dma_semaphore, #tpu.memory_space<semaphore_mem>> -> memref<!tpu.dma_semaphore, #tpu.memory_space<semaphore_mem>>
    tpu.enqueue_dma source(%32 : memref<128xf32, #tpu.memory_space<any>>) target(%34 : memref<128xf32, #tpu.memory_space<vmem>>) target_semaphore(%36 : memref<!tpu.dma_semaphore, #tpu.memory_space<semaphore_mem>>)
    %c2_i32 = arith.constant 2 : i32
    %37 = arith.addi %0, %c2_i32 : i32
    %38 = arith.index_cast %37 : i32 to index
    %39 = memref.load %arg1[%38] : memref<8xi32, #tpu.memory_space<smem>>
    %40 = arith.addi %0, %c2_i32 : i32
    %41 = arith.index_cast %40 : i32 to index
    %42 = memref.load %arg2[%41] : memref<8xi32, #tpu.memory_space<smem>>
    %c0_i32_12 = arith.constant 0 : i32
    %c0_i32_13 = arith.constant 0 : i32
    %43 = tpu.memref_slice %arg3[%39, %c0_i32_13] : memref<64x128xf32, #tpu.memory_space<any>> -> memref<1x128xf32, #tpu.memory_space<any>>
    %44 = tpu.memref_squeeze %43 : memref<1x128xf32, #tpu.memory_space<any>> -> memref<128xf32, #tpu.memory_space<any>>
    %c0_i32_14 = arith.constant 0 : i32
    %45 = tpu.memref_slice %arg6[%c2_i32, %c0_i32_14] : memref<8x128xf32, #tpu.memory_space<vmem>> -> memref<1x128xf32, #tpu.memory_space<vmem>>
    %46 = tpu.memref_squeeze %45 : memref<1x128xf32, #tpu.memory_space<vmem>> -> memref<128xf32, #tpu.memory_space<vmem>>
    %47 = tpu.memref_slice %arg8[%c0_i32_12] : memref<2x!tpu.dma_semaphore, #tpu.memory_space<semaphore_mem>> -> memref<1x!tpu.dma_semaphore, #tpu.memory_space<semaphore_mem>>
    %48 = tpu.memref_squeeze %47 : memref<1x!tpu.dma_semaphore, #tpu.memory_space<semaphore_mem>> -> memref<!tpu.dma_semaphore, #tpu.memory_space<semaphore_mem>>
    tpu.enqueue_dma source(%44 : memref<128xf32, #tpu.memory_space<any>>) target(%46 : memref<128xf32, #tpu.memory_space<vmem>>) target_semaphore(%48 : memref<!tpu.dma_semaphore, #tpu.memory_space<semaphore_mem>>)
    %c1_i32_15 = arith.constant 1 : i32
    %c0_i32_16 = arith.constant 0 : i32
    %49 = tpu.memref_slice %arg4[%42, %c0_i32_16] : memref<64x128xf32, #tpu.memory_space<any>> -> memref<1x128xf32, #tpu.memory_space<any>>
    %50 = tpu.memref_squeeze %49 : memref<1x128xf32, #tpu.memory_space<any>> -> memref<128xf32, #tpu.memory_space<any>>
    %c0_i32_17 = arith.constant 0 : i32
    %51 = tpu.memref_slice %arg7[%c2_i32, %c0_i32_17] : memref<8x128xf32, #tpu.memory_space<vmem>> -> memref<1x128xf32, #tpu.memory_space<vmem>>
    %52 = tpu.memref_squeeze %51 : memref<1x128xf32, #tpu.memory_space<vmem>> -> memref<128xf32, #tpu.memory_space<vmem>>
    %53 = tpu.memref_slice %arg8[%c1_i32_15] : memref<2x!tpu.dma_semaphore, #tpu.memory_space<semaphore_mem>> -> memref<1x!tpu.dma_semaphore, #tpu.memory_space<semaphore_mem>>
    %54 = tpu.memref_squeeze %53 : memref<1x!tpu.dma_semaphore, #tpu.memory_space<semaphore_mem>> -> memref<!tpu.dma_semaphore, #tpu.memory_space<semaphore_mem>>
    tpu.enqueue_dma source(%50 : memref<128xf32, #tpu.memory_space<any>>) target(%52 : memref<128xf32, #tpu.memory_space<vmem>>) target_semaphore(%54 : memref<!tpu.dma_semaphore, #tpu.memory_space<semaphore_mem>>)
    %c3_i32 = arith.constant 3 : i32
    %55 = arith.addi %0, %c3_i32 : i32
    %56 = arith.index_cast %55 : i32 to index
    %57 = memref.load %arg1[%56] : memref<8xi32, #tpu.memory_space<smem>>
    %58 = arith.addi %0, %c3_i32 : i32
    %59 = arith.index_cast %58 : i32 to index
    %60 = memref.load %arg2[%59] : memref<8xi32, #tpu.memory_space<smem>>
    %c0_i32_18 = arith.constant 0 : i32
    %c0_i32_19 = arith.constant 0 : i32
    %61 = tpu.memref_slice %arg3[%57, %c0_i32_19] : memref<64x128xf32, #tpu.memory_space<any>> -> memref<1x128xf32, #tpu.memory_space<any>>
    %62 = tpu.memref_squeeze %61 : memref<1x128xf32, #tpu.memory_space<any>> -> memref<128xf32, #tpu.memory_space<any>>
    %c0_i32_20 = arith.constant 0 : i32
    %63 = tpu.memref_slice %arg6[%c3_i32, %c0_i32_20] : memref<8x128xf32, #tpu.memory_space<vmem>> -> memref<1x128xf32, #tpu.memory_space<vmem>>
    %64 = tpu.memref_squeeze %63 : memref<1x128xf32, #tpu.memory_space<vmem>> -> memref<128xf32, #tpu.memory_space<vmem>>
    %65 = tpu.memref_slice %arg8[%c0_i32_18] : memref<2x!tpu.dma_semaphore, #tpu.memory_space<semaphore_mem>> -> memref<1x!tpu.dma_semaphore, #tpu.memory_space<semaphore_mem>>
    %66 = tpu.memref_squeeze %65 : memref<1x!tpu.dma_semaphore, #tpu.memory_space<semaphore_mem>> -> memref<!tpu.dma_semaphore, #tpu.memory_space<semaphore_mem>>
    tpu.enqueue_dma source(%62 : memref<128xf32, #tpu.memory_space<any>>) target(%64 : memref<128xf32, #tpu.memory_space<vmem>>) target_semaphore(%66 : memref<!tpu.dma_semaphore, #tpu.memory_space<semaphore_mem>>)
    %c1_i32_21 = arith.constant 1 : i32
    %c0_i32_22 = arith.constant 0 : i32
    %67 = tpu.memref_slice %arg4[%60, %c0_i32_22] : memref<64x128xf32, #tpu.memory_space<any>> -> memref<1x128xf32, #tpu.memory_space<any>>
    %68 = tpu.memref_squeeze %67 : memref<1x128xf32, #tpu.memory_space<any>> -> memref<128xf32, #tpu.memory_space<any>>
    %c0_i32_23 = arith.constant 0 : i32
    %69 = tpu.memref_slice %arg7[%c3_i32, %c0_i32_23] : memref<8x128xf32, #tpu.memory_space<vmem>> -> memref<1x128xf32, #tpu.memory_space<vmem>>
    %70 = tpu.memref_squeeze %69 : memref<1x128xf32, #tpu.memory_space<vmem>> -> memref<128xf32, #tpu.memory_space<vmem>>
    %71 = tpu.memref_slice %arg8[%c1_i32_21] : memref<2x!tpu.dma_semaphore, #tpu.memory_space<semaphore_mem>> -> memref<1x!tpu.dma_semaphore, #tpu.memory_space<semaphore_mem>>
    %72 = tpu.memref_squeeze %71 : memref<1x!tpu.dma_semaphore, #tpu.memory_space<semaphore_mem>> -> memref<!tpu.dma_semaphore, #tpu.memory_space<semaphore_mem>>
    tpu.enqueue_dma source(%68 : memref<128xf32, #tpu.memory_space<any>>) target(%70 : memref<128xf32, #tpu.memory_space<vmem>>) target_semaphore(%72 : memref<!tpu.dma_semaphore, #tpu.memory_space<semaphore_mem>>)
    %c4_i32 = arith.constant 4 : i32
    %73 = arith.addi %0, %c4_i32 : i32
    %74 = arith.index_cast %73 : i32 to index
    %75 = memref.load %arg1[%74] : memref<8xi32, #tpu.memory_space<smem>>
    %76 = arith.addi %0, %c4_i32 : i32
    %77 = arith.index_cast %76 : i32 to index
    %78 = memref.load %arg2[%77] : memref<8xi32, #tpu.memory_space<smem>>
    %c0_i32_24 = arith.constant 0 : i32
    %c0_i32_25 = arith.constant 0 : i32
    %79 = tpu.memref_slice %arg3[%75, %c0_i32_25] : memref<64x128xf32, #tpu.memory_space<any>> -> memref<1x128xf32, #tpu.memory_space<any>>
    %80 = tpu.memref_squeeze %79 : memref<1x128xf32, #tpu.memory_space<any>> -> memref<128xf32, #tpu.memory_space<any>>
    %c0_i32_26 = arith.constant 0 : i32
    %81 = tpu.memref_slice %arg6[%c4_i32, %c0_i32_26] : memref<8x128xf32, #tpu.memory_space<vmem>> -> memref<1x128xf32, #tpu.memory_space<vmem>>
    %82 = tpu.memref_squeeze %81 : memref<1x128xf32, #tpu.memory_space<vmem>> -> memref<128xf32, #tpu.memory_space<vmem>>
    %83 = tpu.memref_slice %arg8[%c0_i32_24] : memref<2x!tpu.dma_semaphore, #tpu.memory_space<semaphore_mem>> -> memref<1x!tpu.dma_semaphore, #tpu.memory_space<semaphore_mem>>
    %84 = tpu.memref_squeeze %83 : memref<1x!tpu.dma_semaphore, #tpu.memory_space<semaphore_mem>> -> memref<!tpu.dma_semaphore, #tpu.memory_space<semaphore_mem>>
    tpu.enqueue_dma source(%80 : memref<128xf32, #tpu.memory_space<any>>) target(%82 : memref<128xf32, #tpu.memory_space<vmem>>) target_semaphore(%84 : memref<!tpu.dma_semaphore, #tpu.memory_space<semaphore_mem>>)
    %c1_i32_27 = arith.constant 1 : i32
    %c0_i32_28 = arith.constant 0 : i32
    %85 = tpu.memref_slice %arg4[%78, %c0_i32_28] : memref<64x128xf32, #tpu.memory_space<any>> -> memref<1x128xf32, #tpu.memory_space<any>>
    %86 = tpu.memref_squeeze %85 : memref<1x128xf32, #tpu.memory_space<any>> -> memref<128xf32, #tpu.memory_space<any>>
    %c0_i32_29 = arith.constant 0 : i32
    %87 = tpu.memref_slice %arg7[%c4_i32, %c0_i32_29] : memref<8x128xf32, #tpu.memory_space<vmem>> -> memref<1x128xf32, #tpu.memory_space<vmem>>
    %88 = tpu.memref_squeeze %87 : memref<1x128xf32, #tpu.memory_space<vmem>> -> memref<128xf32, #tpu.memory_space<vmem>>
    %89 = tpu.memref_slice %arg8[%c1_i32_27] : memref<2x!tpu.dma_semaphore, #tpu.memory_space<semaphore_mem>> -> memref<1x!tpu.dma_semaphore, #tpu.memory_space<semaphore_mem>>
    %90 = tpu.memref_squeeze %89 : memref<1x!tpu.dma_semaphore, #tpu.memory_space<semaphore_mem>> -> memref<!tpu.dma_semaphore, #tpu.memory_space<semaphore_mem>>
    tpu.enqueue_dma source(%86 : memref<128xf32, #tpu.memory_space<any>>) target(%88 : memref<128xf32, #tpu.memory_space<vmem>>) target_semaphore(%90 : memref<!tpu.dma_semaphore, #tpu.memory_space<semaphore_mem>>)
    %c5_i32 = arith.constant 5 : i32
    %91 = arith.addi %0, %c5_i32 : i32
    %92 = arith.index_cast %91 : i32 to index
    %93 = memref.load %arg1[%92] : memref<8xi32, #tpu.memory_space<smem>>
    %94 = arith.addi %0, %c5_i32 : i32
    %95 = arith.index_cast %94 : i32 to index
    %96 = memref.load %arg2[%95] : memref<8xi32, #tpu.memory_space<smem>>
    %c0_i32_30 = arith.constant 0 : i32
    %c0_i32_31 = arith.constant 0 : i32
    %97 = tpu.memref_slice %arg3[%93, %c0_i32_31] : memref<64x128xf32, #tpu.memory_space<any>> -> memref<1x128xf32, #tpu.memory_space<any>>
    %98 = tpu.memref_squeeze %97 : memref<1x128xf32, #tpu.memory_space<any>> -> memref<128xf32, #tpu.memory_space<any>>
    %c0_i32_32 = arith.constant 0 : i32
    %99 = tpu.memref_slice %arg6[%c5_i32, %c0_i32_32] : memref<8x128xf32, #tpu.memory_space<vmem>> -> memref<1x128xf32, #tpu.memory_space<vmem>>
    %100 = tpu.memref_squeeze %99 : memref<1x128xf32, #tpu.memory_space<vmem>> -> memref<128xf32, #tpu.memory_space<vmem>>
    %101 = tpu.memref_slice %arg8[%c0_i32_30] : memref<2x!tpu.dma_semaphore, #tpu.memory_space<semaphore_mem>> -> memref<1x!tpu.dma_semaphore, #tpu.memory_space<semaphore_mem>>
    %102 = tpu.memref_squeeze %101 : memref<1x!tpu.dma_semaphore, #tpu.memory_space<semaphore_mem>> -> memref<!tpu.dma_semaphore, #tpu.memory_space<semaphore_mem>>
    tpu.enqueue_dma source(%98 : memref<128xf32, #tpu.memory_space<any>>) target(%100 : memref<128xf32, #tpu.memory_space<vmem>>) target_semaphore(%102 : memref<!tpu.dma_semaphore, #tpu.memory_space<semaphore_mem>>)
    %c1_i32_33 = arith.constant 1 : i32
    %c0_i32_34 = arith.constant 0 : i32
    %103 = tpu.memref_slice %arg4[%96, %c0_i32_34] : memref<64x128xf32, #tpu.memory_space<any>> -> memref<1x128xf32, #tpu.memory_space<any>>
    %104 = tpu.memref_squeeze %103 : memref<1x128xf32, #tpu.memory_space<any>> -> memref<128xf32, #tpu.memory_space<any>>
    %c0_i32_35 = arith.constant 0 : i32
    %105 = tpu.memref_slice %arg7[%c5_i32, %c0_i32_35] : memref<8x128xf32, #tpu.memory_space<vmem>> -> memref<1x128xf32, #tpu.memory_space<vmem>>
    %106 = tpu.memref_squeeze %105 : memref<1x128xf32, #tpu.memory_space<vmem>> -> memref<128xf32, #tpu.memory_space<vmem>>
    %107 = tpu.memref_slice %arg8[%c1_i32_33] : memref<2x!tpu.dma_semaphore, #tpu.memory_space<semaphore_mem>> -> memref<1x!tpu.dma_semaphore, #tpu.memory_space<semaphore_mem>>
    %108 = tpu.memref_squeeze %107 : memref<1x!tpu.dma_semaphore, #tpu.memory_space<semaphore_mem>> -> memref<!tpu.dma_semaphore, #tpu.memory_space<semaphore_mem>>
    tpu.enqueue_dma source(%104 : memref<128xf32, #tpu.memory_space<any>>) target(%106 : memref<128xf32, #tpu.memory_space<vmem>>) target_semaphore(%108 : memref<!tpu.dma_semaphore, #tpu.memory_space<semaphore_mem>>)
    %c6_i32 = arith.constant 6 : i32
    %109 = arith.addi %0, %c6_i32 : i32
    %110 = arith.index_cast %109 : i32 to index
    %111 = memref.load %arg1[%110] : memref<8xi32, #tpu.memory_space<smem>>
    %112 = arith.addi %0, %c6_i32 : i32
    %113 = arith.index_cast %112 : i32 to index
    %114 = memref.load %arg2[%113] : memref<8xi32, #tpu.memory_space<smem>>
    %c0_i32_36 = arith.constant 0 : i32
    %c0_i32_37 = arith.constant 0 : i32
    %115 = tpu.memref_slice %arg3[%111, %c0_i32_37] : memref<64x128xf32, #tpu.memory_space<any>> -> memref<1x128xf32, #tpu.memory_space<any>>
    %116 = tpu.memref_squeeze %115 : memref<1x128xf32, #tpu.memory_space<any>> -> memref<128xf32, #tpu.memory_space<any>>
    %c0_i32_38 = arith.constant 0 : i32
    %117 = tpu.memref_slice %arg6[%c6_i32, %c0_i32_38] : memref<8x128xf32, #tpu.memory_space<vmem>> -> memref<1x128xf32, #tpu.memory_space<vmem>>
    %118 = tpu.memref_squeeze %117 : memref<1x128xf32, #tpu.memory_space<vmem>> -> memref<128xf32, #tpu.memory_space<vmem>>
    %119 = tpu.memref_slice %arg8[%c0_i32_36] : memref<2x!tpu.dma_semaphore, #tpu.memory_space<semaphore_mem>> -> memref<1x!tpu.dma_semaphore, #tpu.memory_space<semaphore_mem>>
    %120 = tpu.memref_squeeze %119 : memref<1x!tpu.dma_semaphore, #tpu.memory_space<semaphore_mem>> -> memref<!tpu.dma_semaphore, #tpu.memory_space<semaphore_mem>>
    tpu.enqueue_dma source(%116 : memref<128xf32, #tpu.memory_space<any>>) target(%118 : memref<128xf32, #tpu.memory_space<vmem>>) target_semaphore(%120 : memref<!tpu.dma_semaphore, #tpu.memory_space<semaphore_mem>>)
    %c1_i32_39 = arith.constant 1 : i32
    %c0_i32_40 = arith.constant 0 : i32
    %121 = tpu.memref_slice %arg4[%114, %c0_i32_40] : memref<64x128xf32, #tpu.memory_space<any>> -> memref<1x128xf32, #tpu.memory_space<any>>
    %122 = tpu.memref_squeeze %121 : memref<1x128xf32, #tpu.memory_space<any>> -> memref<128xf32, #tpu.memory_space<any>>
    %c0_i32_41 = arith.constant 0 : i32
    %123 = tpu.memref_slice %arg7[%c6_i32, %c0_i32_41] : memref<8x128xf32, #tpu.memory_space<vmem>> -> memref<1x128xf32, #tpu.memory_space<vmem>>
    %124 = tpu.memref_squeeze %123 : memref<1x128xf32, #tpu.memory_space<vmem>> -> memref<128xf32, #tpu.memory_space<vmem>>
    %125 = tpu.memref_slice %arg8[%c1_i32_39] : memref<2x!tpu.dma_semaphore, #tpu.memory_space<semaphore_mem>> -> memref<1x!tpu.dma_semaphore, #tpu.memory_space<semaphore_mem>>
    %126 = tpu.memref_squeeze %125 : memref<1x!tpu.dma_semaphore, #tpu.memory_space<semaphore_mem>> -> memref<!tpu.dma_semaphore, #tpu.memory_space<semaphore_mem>>
    tpu.enqueue_dma source(%122 : memref<128xf32, #tpu.memory_space<any>>) target(%124 : memref<128xf32, #tpu.memory_space<vmem>>) target_semaphore(%126 : memref<!tpu.dma_semaphore, #tpu.memory_space<semaphore_mem>>)
    %c7_i32 = arith.constant 7 : i32
    %127 = arith.addi %0, %c7_i32 : i32
    %128 = arith.index_cast %127 : i32 to index
    %129 = memref.load %arg1[%128] : memref<8xi32, #tpu.memory_space<smem>>
    %130 = arith.addi %0, %c7_i32 : i32
    %131 = arith.index_cast %130 : i32 to index
    %132 = memref.load %arg2[%131] : memref<8xi32, #tpu.memory_space<smem>>
    %c0_i32_42 = arith.constant 0 : i32
    %c0_i32_43 = arith.constant 0 : i32
    %133 = tpu.memref_slice %arg3[%129, %c0_i32_43] : memref<64x128xf32, #tpu.memory_space<any>> -> memref<1x128xf32, #tpu.memory_space<any>>
    %134 = tpu.memref_squeeze %133 : memref<1x128xf32, #tpu.memory_space<any>> -> memref<128xf32, #tpu.memory_space<any>>
    %c0_i32_44 = arith.constant 0 : i32
    %135 = tpu.memref_slice %arg6[%c7_i32, %c0_i32_44] : memref<8x128xf32, #tpu.memory_space<vmem>> -> memref<1x128xf32, #tpu.memory_space<vmem>>
    %136 = tpu.memref_squeeze %135 : memref<1x128xf32, #tpu.memory_space<vmem>> -> memref<128xf32, #tpu.memory_space<vmem>>
    %137 = tpu.memref_slice %arg8[%c0_i32_42] : memref<2x!tpu.dma_semaphore, #tpu.memory_space<semaphore_mem>> -> memref<1x!tpu.dma_semaphore, #tpu.memory_space<semaphore_mem>>
    %138 = tpu.memref_squeeze %137 : memref<1x!tpu.dma_semaphore, #tpu.memory_space<semaphore_mem>> -> memref<!tpu.dma_semaphore, #tpu.memory_space<semaphore_mem>>
    tpu.enqueue_dma source(%134 : memref<128xf32, #tpu.memory_space<any>>) target(%136 : memref<128xf32, #tpu.memory_space<vmem>>) target_semaphore(%138 : memref<!tpu.dma_semaphore, #tpu.memory_space<semaphore_mem>>)
    %c1_i32_45 = arith.constant 1 : i32
    %c0_i32_46 = arith.constant 0 : i32
    %139 = tpu.memref_slice %arg4[%132, %c0_i32_46] : memref<64x128xf32, #tpu.memory_space<any>> -> memref<1x128xf32, #tpu.memory_space<any>>
    %140 = tpu.memref_squeeze %139 : memref<1x128xf32, #tpu.memory_space<any>> -> memref<128xf32, #tpu.memory_space<any>>
    %c0_i32_47 = arith.constant 0 : i32
    %141 = tpu.memref_slice %arg7[%c7_i32, %c0_i32_47] : memref<8x128xf32, #tpu.memory_space<vmem>> -> memref<1x128xf32, #tpu.memory_space<vmem>>
    %142 = tpu.memref_squeeze %141 : memref<1x128xf32, #tpu.memory_space<vmem>> -> memref<128xf32, #tpu.memory_space<vmem>>
    %143 = tpu.memref_slice %arg8[%c1_i32_45] : memref<2x!tpu.dma_semaphore, #tpu.memory_space<semaphore_mem>> -> memref<1x!tpu.dma_semaphore, #tpu.memory_space<semaphore_mem>>
    %144 = tpu.memref_squeeze %143 : memref<1x!tpu.dma_semaphore, #tpu.memory_space<semaphore_mem>> -> memref<!tpu.dma_semaphore, #tpu.memory_space<semaphore_mem>>
    tpu.enqueue_dma source(%140 : memref<128xf32, #tpu.memory_space<any>>) target(%142 : memref<128xf32, #tpu.memory_space<vmem>>) target_semaphore(%144 : memref<!tpu.dma_semaphore, #tpu.memory_space<semaphore_mem>>)
    %c8_i32_48 = arith.constant 8 : i32
    %c0_i32_49 = arith.constant 0 : i32
    %c8_i32_50 = arith.constant 8 : i32
    %145 = arith.addi %c0_i32_49, %c8_i32_50 : i32
    %c1_i32_51 = arith.constant 1 : i32
    scf.for %arg9 = %c0_i32_49 to %145 step %c1_i32_51  : i32 {
      %c0_i32_57 = arith.constant 0 : i32
      %c0_i32_58 = arith.constant 0 : i32
      %c0_i32_59 = arith.constant 0 : i32
      %c0_i32_60 = arith.constant 0 : i32
      %152 = tpu.memref_slice %arg3[%c0_i32_57, %c0_i32_60] : memref<64x128xf32, #tpu.memory_space<any>> -> memref<1x128xf32, #tpu.memory_space<any>>
      %153 = tpu.memref_squeeze %152 : memref<1x128xf32, #tpu.memory_space<any>> -> memref<128xf32, #tpu.memory_space<any>>
      %c0_i32_61 = arith.constant 0 : i32
      %154 = tpu.memref_slice %arg6[%c0_i32_58, %c0_i32_61] : memref<8x128xf32, #tpu.memory_space<vmem>> -> memref<1x128xf32, #tpu.memory_space<vmem>>
      %155 = tpu.memref_squeeze %154 : memref<1x128xf32, #tpu.memory_space<vmem>> -> memref<128xf32, #tpu.memory_space<vmem>>
      %156 = tpu.memref_slice %arg8[%c0_i32_59] : memref<2x!tpu.dma_semaphore, #tpu.memory_space<semaphore_mem>> -> memref<1x!tpu.dma_semaphore, #tpu.memory_space<semaphore_mem>>
      %157 = tpu.memref_squeeze %156 : memref<1x!tpu.dma_semaphore, #tpu.memory_space<semaphore_mem>> -> memref<!tpu.dma_semaphore, #tpu.memory_space<semaphore_mem>>
      tpu.wait_dma2 semaphore(%157 : memref<!tpu.dma_semaphore, #tpu.memory_space<semaphore_mem>>) src(%153 : memref<128xf32, #tpu.memory_space<any>>) dst(%155 : memref<128xf32, #tpu.memory_space<vmem>>)
      %c0_i32_62 = arith.constant 0 : i32
      %c0_i32_63 = arith.constant 0 : i32
      %c1_i32_64 = arith.constant 1 : i32
      %c0_i32_65 = arith.constant 0 : i32
      %158 = tpu.memref_slice %arg4[%c0_i32_62, %c0_i32_65] : memref<64x128xf32, #tpu.memory_space<any>> -> memref<1x128xf32, #tpu.memory_space<any>>
      %159 = tpu.memref_squeeze %158 : memref<1x128xf32, #tpu.memory_space<any>> -> memref<128xf32, #tpu.memory_space<any>>
      %c0_i32_66 = arith.constant 0 : i32
      %160 = tpu.memref_slice %arg7[%c0_i32_63, %c0_i32_66] : memref<8x128xf32, #tpu.memory_space<vmem>> -> memref<1x128xf32, #tpu.memory_space<vmem>>
      %161 = tpu.memref_squeeze %160 : memref<1x128xf32, #tpu.memory_space<vmem>> -> memref<128xf32, #tpu.memory_space<vmem>>
      %162 = tpu.memref_slice %arg8[%c1_i32_64] : memref<2x!tpu.dma_semaphore, #tpu.memory_space<semaphore_mem>> -> memref<1x!tpu.dma_semaphore, #tpu.memory_space<semaphore_mem>>
      %163 = tpu.memref_squeeze %162 : memref<1x!tpu.dma_semaphore, #tpu.memory_space<semaphore_mem>> -> memref<!tpu.dma_semaphore, #tpu.memory_space<semaphore_mem>>
      tpu.wait_dma2 semaphore(%163 : memref<!tpu.dma_semaphore, #tpu.memory_space<semaphore_mem>>) src(%159 : memref<128xf32, #tpu.memory_space<any>>) dst(%161 : memref<128xf32, #tpu.memory_space<vmem>>)
    }
    %c0 = arith.constant 0 : index
    %c0_52 = arith.constant 0 : index
    %146 = vector.load %arg6[%c0, %c0_52] : memref<8x128xf32, #tpu.memory_space<vmem>>, vector<8x128xf32>
    %c0_53 = arith.constant 0 : index
    %c0_54 = arith.constant 0 : index
    %147 = vector.load %arg7[%c0_53, %c0_54] : memref<8x128xf32, #tpu.memory_space<vmem>>, vector<8x128xf32>
    %148 = arith.mulf %146, %147 : vector<8x128xf32>
    %cst = arith.constant dense<0.000000e+00> : vector<8xf32>
    %149 = vector.multi_reduction <add>, %148, %cst [1] : vector<8x128xf32> to vector<8xf32>
    %150 = vector.shape_cast %149 : vector<8xf32> to vector<8x1xf32>
    %c0_55 = arith.constant 0 : index
    %c0_56 = arith.constant 0 : index
    %151 = vector.load %arg5[%c0_55, %c0_56] : memref<8x1xf32, #tpu.memory_space<vmem>>, vector<8x1xf32>
    tpu.vector_store %arg5[%c0_55, %c0_56], %150 {strides = array<i32>} : memref<8x1xf32, #tpu.memory_space<vmem>>, vector<8x1xf32>,
    return
  }
  func.func @transform_2(%arg0: i32, %arg1: memref<8xi32, #tpu.memory_space<smem>>, %arg2: memref<8xi32, #tpu.memory_space<smem>>) -> (i32, i32) {
    %c0_i32 = arith.constant 0 : i32
    %c0_i32_0 = arith.constant 0 : i32
    return %arg0, %c0_i32 : i32, i32
  }
}

</mosaic_0001>

<llo_original>
// kernel: tpu_custom_call.1
$region0: #{tpu_custom_call.1}
  #allocation0 [shape = 'u32[]', space=smem, size = 0x4, offset = 0x4, fixed_abs, tag = 'smem constant byte address 0x4 - core index']
  #allocation1 [shape = 'u32[144,128]{1,0:T(1,128)}', space=vmem, size = 0x12000, scoped, tag = 'internal scratch']
  #allocation2 [shape = 'f32[8,128]{1,0:T(8,128)}', space=vmem, size = 0x1000, scoped, tag = 'scratch operand']
  #allocation3 [shape = 'f32[8,128]{1,0:T(8,128)}', space=vmem, size = 0x1000, scoped, tag = 'scratch operand']
  #allocation4 [shape = 's32[2]{0}', space=sflag, size = 0x8, scoped, tag = 'scratch operand']
  #allocation5 [shape = 's32[1]{0}', space=sflag, size = 0x4, scoped, tag = 'scoped memory for tpu_custom_call.1']
  #allocation6 [shape = 'u8[512]{0}', space=smem, size = 0x200, scoped, tag = 'prefetched SMEM operand 0']
  #allocation7 [shape = 'u8[512]{0}', space=smem, size = 0x200, scoped, tag = 'prefetched SMEM operand 1']
  #allocation8 [shape = 's32[]', space=sflag, size = 0x4, offset = 0, fixed_abs, tag = 'sflag constant byte address 0x0 - dummy sync flag']
  #allocation9 [shape = 's32[]', space=sflag, size = 0x4, offset = 0, fixed_abs, tag = 'sflag constant byte address 0x0 - dummy sync flag']
  #allocation10 [shape = 'u32[]', space=smem, size = 0x4, offset = 0x44, fixed_abs, tag = 'smem constant byte address 0x44 - assertion arg 0']
  #allocation11 [shape = 'u32[]', space=smem, size = 0x4, offset = 0x48, fixed_abs, tag = 'smem constant byte address 0x48 - assertion arg 1']
  #allocation12 [shape = 's32[]', space=sflag, size = 0x4, offset = 0, fixed_abs, tag = 'sflag constant byte address 0x0 - dummy sync flag']
  #allocation13 [shape = 's32[]', space=sflag, size = 0x4, offset = 0, fixed_abs, tag = 'sflag constant byte address 0x0 - dummy sync flag']
  #allocation14 [shape = 's32[]', space=sflag, size = 0x4, offset = 0, fixed_abs, tag = 'sflag constant byte address 0x0 - dummy sync flag']
  #allocation15 [shape = 's32[]', space=sflag, size = 0x4, offset = 0, fixed_abs, tag = 'sflag constant byte address 0x0 - dummy sync flag']
  #allocation16 [shape = 's32[]', space=sflag, size = 0x4, offset = 0, fixed_abs, tag = 'sflag constant byte address 0x0 - dummy sync flag']
  #allocation17 [shape = 's32[]', space=sflag, size = 0x4, offset = 0, fixed_abs, tag = 'sflag constant byte address 0x0 - dummy sync flag']
  #allocation18 [shape = 's32[]', space=sflag, size = 0x4, offset = 0, fixed_abs, tag = 'sflag constant byte address 0x0 - dummy sync flag']
  #allocation19 [shape = 's32[]', space=sflag, size = 0x4, offset = 0, fixed_abs, tag = 'sflag constant byte address 0x0 - dummy sync flag']
  #allocation20 [shape = 's32[]', space=sflag, size = 0x4, offset = 0, fixed_abs, tag = 'sflag constant byte address 0x0 - dummy sync flag']
  #allocation21 [shape = 's32[]', space=sflag, size = 0x4, offset = 0, fixed_abs, tag = 'sflag constant byte address 0x0 - dummy sync flag']
  #allocation22 [shape = 's32[]', space=sflag, size = 0x4, offset = 0, fixed_abs, tag = 'sflag constant byte address 0x0 - dummy sync flag']
  #allocation23 [shape = 's32[]', space=sflag, size = 0x4, offset = 0, fixed_abs, tag = 'sflag constant byte address 0x0 - dummy sync flag']
  #allocation24 [shape = 's32[]', space=sflag, size = 0x4, offset = 0, fixed_abs, tag = 'sflag constant byte address 0x0 - dummy sync flag']
  #allocation25 [shape = 's32[]', space=sflag, size = 0x4, offset = 0, fixed_abs, tag = 'sflag constant byte address 0x0 - dummy sync flag']
  #allocation26 [shape = 's32[]', space=sflag, size = 0x4, offset = 0, fixed_abs, tag = 'sflag constant byte address 0x0 - dummy sync flag']
  #allocation27 [shape = 's32[]', space=sflag, size = 0x4, offset = 0, fixed_abs, tag = 'sflag constant byte address 0x0 - dummy sync flag']
  #allocation28 [shape = 's32[]', space=sflag, size = 0x4, offset = 0, fixed_abs, tag = 'sflag constant byte address 0x0 - dummy sync flag']
  #allocation29 [shape = 's32[]', space=sflag, size = 0x4, offset = 0, fixed_abs, tag = 'sflag constant byte address 0x0 - dummy sync flag']
  #allocation30 [shape = 's32[]', space=sflag, size = 0x4, offset = 0, fixed_abs, tag = 'sflag constant byte address 0x0 - dummy sync flag']
  #allocation31 [shape = 's32[]', space=sflag, size = 0x4, offset = 0, fixed_abs, tag = 'sflag constant byte address 0x0 - dummy sync flag']
  #allocation32 [shape = 's32[]', space=sflag, size = 0x4, offset = 0, fixed_abs, tag = 'sflag constant byte address 0x0 - dummy sync flag']
  #allocation33 [shape = 's32[]', space=sflag, size = 0x4, offset = 0, fixed_abs, tag = 'sflag constant byte address 0x0 - dummy sync flag']
  #allocation34 [shape = 's32[]', space=sflag, size = 0x4, offset = 0, fixed_abs, tag = 'sflag constant byte address 0x0 - dummy sync flag']
  #allocation35 [shape = 's32[]', space=sflag, size = 0x4, offset = 0, fixed_abs, tag = 'sflag constant byte address 0x0 - dummy sync flag']
  #allocation36 [shape = 's32[]', space=sflag, size = 0x4, offset = 0, fixed_abs, tag = 'sflag constant byte address 0x0 - dummy sync flag']
  #allocation37 [shape = 's32[]', space=sflag, size = 0x4, offset = 0, fixed_abs, tag = 'sflag constant byte address 0x0 - dummy sync flag']
  #allocation38 [shape = 's32[]', space=sflag, size = 0x4, offset = 0, fixed_abs, tag = 'sflag constant byte address 0x0 - dummy sync flag']
  #allocation39 [shape = 's32[]', space=sflag, size = 0x4, offset = 0, fixed_abs, tag = 'sflag constant byte address 0x0 - dummy sync flag']
  #allocation40 [shape = 's32[]', space=sflag, size = 0x4, offset = 0, fixed_abs, tag = 'sflag constant byte address 0x0 - dummy sync flag']
  #allocation41 [shape = 's32[]', space=sflag, size = 0x4, offset = 0, fixed_abs, tag = 'sflag constant byte address 0x0 - dummy sync flag']
  %s0 = inlined_call_operand.hbm [shape: s32[8], index: 0, kind: input, shape index: {}]
  %s1 = inlined_call_operand.vmem [shape: s32[8], index: 1, kind: input, shape index: {}]
  %s2 = inlined_call_operand.hbm [shape: f32[64,128], index: 2, kind: input, shape index: {}]
  %s3 = inlined_call_operand.hbm [shape: f32[64,128], index: 3, kind: input, shape index: {}]
  %s4 = inlined_call_operand.vmem [shape: f32[8,1], index: 4, kind: output, shape index: {}]
  %s5 = sld [smem:[#allocation0]]
  $region81: #{tpu_custom_call.1} parent=0
    _
  %s7 = ssub.s32 1, %s5
  %s8 = scalar_select 0, %s7, %s5
  %10 = dma.hbm_to_smem %s0, 16, [#allocation6], [#allocation5]
  %s11 = sshll.u32 %s1, 4
  %s12 = int_to_ptr.vmem [resolvable:$true] %s11
  %14 = dma.vmem_to_smem %s12, 16, [#allocation7], [#allocation5]
  %15 = dma.done [#allocation5], 32
  %16 = sfence
  %s17 = smul.u32 0, 8
  %s18 = sld [smem:[#allocation6 + %s17]]
  %s19 = sld [smem:[#allocation7 + %s17]]
  %s20 = smul.addr %s18, 16
  %s21 = scalar_lea.hbm %s2, %s20
  // Predicated region
  $region2: #{tpu_custom_call.1} parent=0 // pred_check
    _
  $region3: #{tpu_custom_call.1} parent=0 // pred_check_branch
    %23 = sbr.rel target = $region5
  $region4: #{tpu_custom_call.1} parent=0 // pred_region
    %24 = sst [smem:[#allocation10]] [#allocation9]
    %25 = sst [smem:[#allocation11]] [#allocation8]
  $region5: #{tpu_custom_call.1} parent=0 // pred_fallthru
    _
  %27 = shalt.err (0)
  %s29 = sshll.u32 [#allocation2], 4
  %s30 = int_to_ptr.vmem [resolvable:$true] %s29
  %32 = dma.hbm_to_vmem [thread:$0]  %s21, 16, %s30, [#allocation4]
  %s33 = smul.addr %s19, 16
  %s34 = scalar_lea.hbm %s3, %s33
  %s35 = scalar_lea.sflag [#allocation4], 1
  // Predicated region
  $region6: #{tpu_custom_call.1} parent=0 // pred_check
    _
  $region7: #{tpu_custom_call.1} parent=0 // pred_check_branch
    %37 = sbr.rel target = $region9
  $region8: #{tpu_custom_call.1} parent=0 // pred_region
    %38 = sst [smem:[#allocation10]] [#allocation13]
    %39 = sst [smem:[#allocation11]] [#allocation12]
  $region9: #{tpu_custom_call.1} parent=0 // pred_fallthru
    _
  %41 = shalt.err (0)
  %s43 = sshll.u32 [#allocation3], 4
  %s44 = int_to_ptr.vmem [resolvable:$true] %s43
  %46 = dma.hbm_to_vmem [thread:$0]  %s34, 16, %s44, %s35
  %s47 = sadd.s32 %s17, 1
  %s48 = sld [smem:[#allocation6 + %s47]]
  %s49 = sld [smem:[#allocation7 + %s47]]
  %s50 = smul.addr %s48, 16
  %s51 = scalar_lea.hbm %s2, %s50
  %s52 = scalar_lea.vmem [#allocation2], 1
  // Predicated region
  $region10: #{tpu_custom_call.1} parent=0 // pred_check
    _
  $region11: #{tpu_custom_call.1} parent=0 // pred_check_branch
    %54 = sbr.rel target = $region13
  $region12: #{tpu_custom_call.1} parent=0 // pred_region
    %55 = sst [smem:[#allocation10]] [#allocation15]
    %56 = sst [smem:[#allocation11]] [#allocation14]
  $region13: #{tpu_custom_call.1} parent=0 // pred_fallthru
    _
  %58 = shalt.err (0)
  %s60 = sshll.u32 %s52, 4
  %s61 = int_to_ptr.vmem [resolvable:$true] %s60
  %63 = dma.hbm_to_vmem [thread:$0]  %s51, 16, %s61, [#allocation4]
  %s64 = smul.addr %s49, 16
  %s65 = scalar_lea.hbm %s3, %s64
  %s66 = scalar_lea.vmem [#allocation3], 1
  // Predicated region
  $region14: #{tpu_custom_call.1} parent=0 // pred_check
    _
  $region15: #{tpu_custom_call.1} parent=0 // pred_check_branch
    %68 = sbr.rel target = $region17
  $region16: #{tpu_custom_call.1} parent=0 // pred_region
    %69 = sst [smem:[#allocation10]] [#allocation17]
    %70 = sst [smem:[#allocation11]] [#allocation16]
  $region17: #{tpu_custom_call.1} parent=0 // pred_fallthru
    _
  %72 = shalt.err (0)
  %s74 = sshll.u32 %s66, 4
  %s75 = int_to_ptr.vmem [resolvable:$true] %s74
  %77 = dma.hbm_to_vmem [thread:$0]  %s65, 16, %s75, %s35
  %s78 = sadd.s32 %s17, 2
  %s79 = sld [smem:[#allocation6 + %s78]]
  %s80 = sld [smem:[#allocation7 + %s78]]
  %s81 = smul.addr %s79, 16
  %s82 = scalar_lea.hbm %s2, %s81
  %s83 = scalar_lea.vmem [#allocation2], 2
  // Predicated region
  $region18: #{tpu_custom_call.1} parent=0 // pred_check
    _
  $region19: #{tpu_custom_call.1} parent=0 // pred_check_branch
    %85 = sbr.rel target = $region21
  $region20: #{tpu_custom_call.1} parent=0 // pred_region
    %86 = sst [smem:[#allocation10]] [#allocation19]
    %87 = sst [smem:[#allocation11]] [#allocation18]
  $region21: #{tpu_custom_call.1} parent=0 // pred_fallthru
    _
  %89 = shalt.err (0)
  %s91 = sshll.u32 %s83, 4
  %s92 = int_to_ptr.vmem [resolvable:$true] %s91
  %94 = dma.hbm_to_vmem [thread:$0]  %s82, 16, %s92, [#allocation4]
  %s95 = smul.addr %s80, 16
  %s96 = scalar_lea.hbm %s3, %s95
  %s97 = scalar_lea.vmem [#allocation3], 2
  // Predicated region
  $region22: #{tpu_custom_call.1} parent=0 // pred_check
    _
  $region23: #{tpu_custom_call.1} parent=0 // pred_check_branch
    %99 = sbr.rel target = $region25
  $region24: #{tpu_custom_call.1} parent=0 // pred_region
    %100 = sst [smem:[#allocation10]] [#allocation21]
    %101 = sst [smem:[#allocation11]] [#allocation20]
  $region25: #{tpu_custom_call.1} parent=0 // pred_fallthru
    _
  %103 = shalt.err (0)
  %s105 = sshll.u32 %s97, 4
  %s106 = int_to_ptr.vmem [resolvable:$true] %s105
  %108 = dma.hbm_to_vmem [thread:$0]  %s96, 16, %s106, %s35
  %s109 = sadd.s32 %s17, 3
  %s110 = sld [smem:[#allocation6 + %s109]]
  %s111 = sld [smem:[#allocation7 + %s109]]
  %s112 = smul.addr %s110, 16
  %s113 = scalar_lea.hbm %s2, %s112
  %s114 = scalar_lea.vmem [#allocation2], 3
  // Predicated region
  $region26: #{tpu_custom_call.1} parent=0 // pred_check
    _
  $region27: #{tpu_custom_call.1} parent=0 // pred_check_branch
    %116 = sbr.rel target = $region29
  $region28: #{tpu_custom_call.1} parent=0 // pred_region
    %117 = sst [smem:[#allocation10]] [#allocation23]
    %118 = sst [smem:[#allocation11]] [#allocation22]
  $region29: #{tpu_custom_call.1} parent=0 // pred_fallthru
    _
  %120 = shalt.err (0)
  %s122 = sshll.u32 %s114, 4
  %s123 = int_to_ptr.vmem [resolvable:$true] %s122
  %125 = dma.hbm_to_vmem [thread:$0]  %s113, 16, %s123, [#allocation4]
  %s126 = smul.addr %s111, 16
  %s127 = scalar_lea.hbm %s3, %s126
  %s128 = scalar_lea.vmem [#allocation3], 3
  // Predicated region
  $region30: #{tpu_custom_call.1} parent=0 // pred_check
    _
  $region31: #{tpu_custom_call.1} parent=0 // pred_check_branch
    %130 = sbr.rel target = $region33
  $region32: #{tpu_custom_call.1} parent=0 // pred_region
    %131 = sst [smem:[#allocation10]] [#allocation25]
    %132 = sst [smem:[#allocation11]] [#allocation24]
  $region33: #{tpu_custom_call.1} parent=0 // pred_fallthru
    _
  %134 = shalt.err (0)
  %s136 = sshll.u32 %s128, 4
  %s137 = int_to_ptr.vmem [resolvable:$true] %s136
  %139 = dma.hbm_to_vmem [thread:$0]  %s127, 16, %s137, %s35
  %s140 = sadd.s32 %s17, 4
  %s141 = sld [smem:[#allocation6 + %s140]]
  %s142 = sld [smem:[#allocation7 + %s140]]
  %s143 = smul.addr %s141, 16
  %s144 = scalar_lea.hbm %s2, %s143
  %s145 = scalar_lea.vmem [#allocation2], 4
  // Predicated region
  $region34: #{tpu_custom_call.1} parent=0 // pred_check
    _
  $region35: #{tpu_custom_call.1} parent=0 // pred_check_branch
    %147 = sbr.rel target = $region37
  $region36: #{tpu_custom_call.1} parent=0 // pred_region
    %148 = sst [smem:[#allocation10]] [#allocation27]
    %149 = sst [smem:[#allocation11]] [#allocation26]
  $region37: #{tpu_custom_call.1} parent=0 // pred_fallthru
    _
  %151 = shalt.err (0)
  %s153 = sshll.u32 %s145, 4
  %s154 = int_to_ptr.vmem [resolvable:$true] %s153
  %156 = dma.hbm_to_vmem [thread:$0]  %s144, 16, %s154, [#allocation4]
  %s157 = smul.addr %s142, 16
  %s158 = scalar_lea.hbm %s3, %s157
  %s159 = scalar_lea.vmem [#allocation3], 4
  // Predicated region
  $region38: #{tpu_custom_call.1} parent=0 // pred_check
    _
  $region39: #{tpu_custom_call.1} parent=0 // pred_check_branch
    %161 = sbr.rel target = $region41
  $region40: #{tpu_custom_call.1} parent=0 // pred_region
    %162 = sst [smem:[#allocation10]] [#allocation29]
    %163 = sst [smem:[#allocation11]] [#allocation28]
  $region41: #{tpu_custom_call.1} parent=0 // pred_fallthru
    _
  %165 = shalt.err (0)
  %s167 = sshll.u32 %s159, 4
  %s168 = int_to_ptr.vmem [resolvable:$true] %s167
  %170 = dma.hbm_to_vmem [thread:$0]  %s158, 16, %s168, %s35
  %s171 = sadd.s32 %s17, 5
  %s172 = sld [smem:[#allocation6 + %s171]]
  %s173 = sld [smem:[#allocation7 + %s171]]
  %s174 = smul.addr %s172, 16
  %s175 = scalar_lea.hbm %s2, %s174
  %s176 = scalar_lea.vmem [#allocation2], 5
  // Predicated region
  $region42: #{tpu_custom_call.1} parent=0 // pred_check
    _
  $region43: #{tpu_custom_call.1} parent=0 // pred_check_branch
    %178 = sbr.rel target = $region45
  $region44: #{tpu_custom_call.1} parent=0 // pred_region
    %179 = sst [smem:[#allocation10]] [#allocation31]
    %180 = sst [smem:[#allocation11]] [#allocation30]
  $region45: #{tpu_custom_call.1} parent=0 // pred_fallthru
    _
  %182 = shalt.err (0)
  %s184 = sshll.u32 %s176, 4
  %s185 = int_to_ptr.vmem [resolvable:$true] %s184
  %187 = dma.hbm_to_vmem [thread:$0]  %s175, 16, %s185, [#allocation4]
  %s188 = smul.addr %s173, 16
  %s189 = scalar_lea.hbm %s3, %s188
  %s190 = scalar_lea.vmem [#allocation3], 5
  // Predicated region
  $region46: #{tpu_custom_call.1} parent=0 // pred_check
    _
  $region47: #{tpu_custom_call.1} parent=0 // pred_check_branch
    %192 = sbr.rel target = $region49
  $region48: #{tpu_custom_call.1} parent=0 // pred_region
    %193 = sst [smem:[#allocation10]] [#allocation33]
    %194 = sst [smem:[#allocation11]] [#allocation32]
  $region49: #{tpu_custom_call.1} parent=0 // pred_fallthru
    _
  %196 = shalt.err (0)
  %s198 = sshll.u32 %s190, 4
  %s199 = int_to_ptr.vmem [resolvable:$true] %s198
  %201 = dma.hbm_to_vmem [thread:$0]  %s189, 16, %s199, %s35
  %s202 = sadd.s32 %s17, 6
  %s203 = sld [smem:[#allocation6 + %s202]]
  %s204 = sld [smem:[#allocation7 + %s202]]
  %s205 = smul.addr %s203, 16
  %s206 = scalar_lea.hbm %s2, %s205
  %s207 = scalar_lea.vmem [#allocation2], 6
  // Predicated region
  $region50: #{tpu_custom_call.1} parent=0 // pred_check
    _
  $region51: #{tpu_custom_call.1} parent=0 // pred_check_branch
    %209 = sbr.rel target = $region53
  $region52: #{tpu_custom_call.1} parent=0 // pred_region
    %210 = sst [smem:[#allocation10]] [#allocation35]
    %211 = sst [smem:[#allocation11]] [#allocation34]
  $region53: #{tpu_custom_call.1} parent=0 // pred_fallthru
    _
  %213 = shalt.err (0)
  %s215 = sshll.u32 %s207, 4
  %s216 = int_to_ptr.vmem [resolvable:$true] %s215
  %218 = dma.hbm_to_vmem [thread:$0]  %s206, 16, %s216, [#allocation4]
  %s219 = smul.addr %s204, 16
  %s220 = scalar_lea.hbm %s3, %s219
  %s221 = scalar_lea.vmem [#allocation3], 6
  // Predicated region
  $region54: #{tpu_custom_call.1} parent=0 // pred_check
    _
  $region55: #{tpu_custom_call.1} parent=0 // pred_check_branch
    %223 = sbr.rel target = $region57
  $region56: #{tpu_custom_call.1} parent=0 // pred_region
    %224 = sst [smem:[#allocation10]] [#allocation37]
    %225 = sst [smem:[#allocation11]] [#allocation36]
  $region57: #{tpu_custom_call.1} parent=0 // pred_fallthru
    _
  %227 = shalt.err (0)
  %s229 = sshll.u32 %s221, 4
  %s230 = int_to_ptr.vmem [resolvable:$true] %s229
  %232 = dma.hbm_to_vmem [thread:$0]  %s220, 16, %s230, %s35
  %s233 = sadd.s32 %s17, 7
  %s234 = sld [smem:[#allocation6 + %s233]]
  %s235 = sld [smem:[#allocation7 + %s233]]
  %s236 = smul.addr %s234, 16
  %s237 = scalar_lea.hbm %s2, %s236
  %s238 = scalar_lea.vmem [#allocation2], 7
  // Predicated region
  $region58: #{tpu_custom_call.1} parent=0 // pred_check
    _
  $region59: #{tpu_custom_call.1} parent=0 // pred_check_branch
    %240 = sbr.rel target = $region61
  $region60: #{tpu_custom_call.1} parent=0 // pred_region
    %241 = sst [smem:[#allocation10]] [#allocation39]
    %242 = sst [smem:[#allocation11]] [#allocation38]
  $region61: #{tpu_custom_call.1} parent=0 // pred_fallthru
    _
  %244 = shalt.err (0)
  %s246 = sshll.u32 %s238, 4
  %s247 = int_to_ptr.vmem [resolvable:$true] %s246
  %249 = dma.hbm_to_vmem [thread:$0]  %s237, 16, %s247, [#allocation4]
  %s250 = smul.addr %s235, 16
  %s251 = scalar_lea.hbm %s3, %s250
  %s252 = scalar_lea.vmem [#allocation3], 7
  // Predicated region
  $region62: #{tpu_custom_call.1} parent=0 // pred_check
    _
  $region63: #{tpu_custom_call.1} parent=0 // pred_check_branch
    %254 = sbr.rel target = $region65
  $region64: #{tpu_custom_call.1} parent=0 // pred_region
    %255 = sst [smem:[#allocation10]] [#allocation41]
    %256 = sst [smem:[#allocation11]] [#allocation40]
  $region65: #{tpu_custom_call.1} parent=0 // pred_fallthru
    _
  %258 = shalt.err (0)
  %s260 = sshll.u32 %s252, 4
  %s261 = int_to_ptr.vmem [resolvable:$true] %s260
  %263 = dma.hbm_to_vmem [thread:$0]  %s251, 16, %s261, %s35
  loop: start=0, step=1, limit=8
  $region66: #{tpu_custom_call.1} parent=0 // loop_pre_header
    _
  $region67: #{tpu_custom_call.1} parent=0 // loop_header
    %s265 = sphi 0, %s269
    %p266 = scmp.ge.s32.totalorder %s265, 8
  $region68: #{tpu_custom_call.1} parent=0 // loop_header_branch
    %268 = sbr.rel (%p266) target = $region72
  $region69: #{tpu_custom_call.1} parent=0 // loop_body
    %271 = dma.done [#allocation4], 16
    %273 = dma.done %s35, 16
  $region70: #{tpu_custom_call.1} parent=0 // loop_footer
    %s269 = sadd.s32 1, %s265
  $region71: #{tpu_custom_call.1} parent=0 // loop_footer_branch
    %264 = sbr.rel target = $region67
  $region72: #{tpu_custom_call.1} parent=0 // loop_exit
    _
  %v274 = vld [vmem:[#allocation2] sm:$0xff]
  %v275 = vld [vmem:[#allocation3] sm:$0xff]
  %v276 = vmul.f32 %v274, %v275
  %277 = vadd.xlane.f32.xlu0 %v276
  %v278 = vpop.xlane.xlu0 %277
  %vm279 = vcmask 7168
  %280 = vst.msk [vmem:[%s4] sm:$0xff] %vm279, %v278
  // Predicated region
  $region73: #{tpu_custom_call.1} parent=0 // pred_check
    _
  $region74: #{tpu_custom_call.1} parent=0 // pred_check_branch
    %282 = sbr.rel (0) target = $region76
  $region75: #{tpu_custom_call.1} parent=0 // pred_region
    _
  $region76: #{tpu_custom_call.1} parent=0 // pred_fallthru
    _
  // Predicated region
  $region77: #{tpu_custom_call.1} parent=0 // pred_check
    _
  $region78: #{tpu_custom_call.1} parent=0 // pred_check_branch
    %284 = sbr.rel (0) target = $region80
  $region79: #{tpu_custom_call.1} parent=0 // pred_region
    _
  $region80: #{tpu_custom_call.1} parent=0 // pred_fallthru
    _
  %285 = vsyncmov [#allocation4]
  %s286 = vpop.sfrf %285
  %p287 = scmp.eq.s32.totalorder %s286, 0
  %p288 = pneg %p287
  %290 = shalt.err (%p288)
  %s291 = scalar_lea.sflag [#allocation4], 1
  %292 = vsyncmov %s291
  %s293 = vpop.sfrf %292
  %p294 = scmp.eq.s32.totalorder %s293, 0
  %p295 = pneg %p294
  %297 = shalt.err (%p295)

</llo_original>
